<compile_context>
chip_gen: v5e
topology: v5e:2x2
jax: 0.10.0
libtpu: 0.0.40
codegen_flags: <defaults>
</compile_context>

<pallas_src>
import functools
import math

import jax
import jax.numpy as jnp
import numpy as np
from jax import lax
from jax.experimental import pallas as pl
from jax.experimental.pallas import tpu as pltpu


def _round_up(x, m):
    return ((x + m - 1) // m) * m


def _generation_defaults():
    """Generation-aware tile / chunk / VMEM-budget defaults.

    v5e / v6e have 128 MiB VMEM -> bigger tiles, bigger recurrence chunks,
    96 MiB scoped limit.  v7x has 64 MiB per TensorCore -> conservative tiles
    and a 48 MiB limit.  Falls back to the conservative settings if the
    hardware query is unavailable.
    """
    vmem = 64 * 2 ** 20
    cores = 1
    try:
        info = pltpu.get_tpu_info()
        for attr in ("vmem_capacity_bytes", "vmem_size_bytes", "vmem_bytes"):
            val = getattr(info, attr, None)
            if val:
                vmem = int(val)
                break
        for attr in ("num_tensorcores", "tensorcore_count", "num_cores",
                     "core_count"):
            val = getattr(info, attr, None)
            if val:
                cores = int(val)
                break
    except Exception:  # pragma: no cover - conservative fallback
        pass
    if vmem >= 100 * 2 ** 20:           # v5e / v6e (128 MiB physical VMEM)
        return dict(vmem_limit=96 * 2 ** 20, tm=512, tn=1024, tk=512,
                    chunk=16, cores=cores)
    return dict(vmem_limit=48 * 2 ** 20, tm=256, tn=512, tk=512,
                chunk=8, cores=cores)   # v7x-safe


_GEN = _generation_defaults()


# --------------------------------------------------------------------------
# Pallas kernel 1: tiled linear  y = x @ W^T + b
#   Weights are pre-transposed / pre-padded / pre-cast to bf16 (once, outside
#   the forward).  Activations stay f32 in HBM and are cast in-kernel.
#   f32 accumulation in VMEM scratch, grid = (rows, cols, reduction).
# Used for both the hoisted LSTM input projection and the decoder.
# --------------------------------------------------------------------------
def _weight_dims(K, V):
    tn = min(_GEN["tn"], _round_up(V, 128))
    tk = min(_GEN["tk"], _round_up(K, 128))
    return tn, tk, _round_up(K, tk), _round_up(V, tn)


def prepare_linear(weight, bias):
    """One-time prep of a Linear layer: weight (V, K) f32 -> (K_pad, V_pad)
    bf16; bias (V,) -> (1, V_pad) f32.  Zero padding of the K rows keeps the
    tiled reduction exact."""
    V, K = weight.shape
    _, _, K_pad, V_pad = _weight_dims(K, V)
    w_p = jnp.zeros((K_pad, V_pad), jnp.bfloat16).at[:K, :V].set(
        jnp.transpose(weight).astype(jnp.bfloat16))
    b_p = jnp.zeros((1, V_pad), jnp.float32).at[0, :V].set(
        bias.astype(jnp.float32))
    return {"w": w_p, "b": b_p, "in_features": K, "out_features": V}


def _linear_kernel(x_ref, w_ref, b_ref, o_ref, acc_ref):
    @pl.when(pl.program_id(2) == 0)
    def _():
        acc_ref[...] = jnp.zeros_like(acc_ref)

    # x stays f32 in HBM; cast to bf16 on the fly for the MXU.
    acc_ref[...] += jnp.dot(x_ref[...].astype(jnp.bfloat16), w_ref[...],
                            preferred_element_type=jnp.float32)

    @pl.when(pl.program_id(2) == pl.num_programs(2) - 1)
    def _():
        o_ref[...] = (acc_ref[...] + b_ref[...]).astype(o_ref.dtype)


def linear(x, prepared, *, out_dtype=jnp.float32):
    """x: (N, K) f32; prepared: dict from prepare_linear.  Returns (N, V)."""
    N, K = x.shape
    V = prepared["out_features"]
    assert K == prepared["in_features"]
    tn, tk, K_pad, V_pad = _weight_dims(K, V)
    tm = min(_GEN["tm"], _round_up(N, 8))
    N_pad = _round_up(N, tm)

    # Only copy the activations when the shapes are not already tile aligned
    # (the K zero-padding is required for the tiled reduction to stay exact).
    if (N_pad, K_pad) != (N, K):
        x = jnp.zeros((N_pad, K_pad), x.dtype).at[:N, :K].set(x)

    out = pl.pallas_call(
        _linear_kernel,
        out_shape=jax.ShapeDtypeStruct((N_pad, V_pad), out_dtype),
        grid_spec=pltpu.PrefetchScalarGridSpec(
            num_scalar_prefetch=0,
            grid=(N_pad // tm, V_pad // tn, K_pad // tk),
            in_specs=[
                pl.BlockSpec((tm, tk), lambda i, j, k: (i, k)),
                pl.BlockSpec((tk, tn), lambda i, j, k: (k, j)),
                pl.BlockSpec((1, tn), lambda i, j, k: (0, j)),
            ],
            out_specs=pl.BlockSpec((tm, tn), lambda i, j, k: (i, j)),
            scratch_shapes=[pltpu.VMEM((tm, tn), jnp.float32)],
        ),
        compiler_params=pltpu.CompilerParams(
            dimension_semantics=("parallel", "parallel", "arbitrary"),
            vmem_limit_bytes=_GEN["vmem_limit"]),
    )(x, prepared["w"], prepared["b"])
    if (N_pad, V_pad) != (N, V):
        out = out[:N, :V]
    return out


# --------------------------------------------------------------------------
# Pallas kernel 2: LSTM recurrence over pre-computed input gates.
#   gates[t] = x_t @ W_ih^T + (b_ih + b_hh)     (bf16, computed by `linear`)
#   Per step only  gates[t] + h @ W_hh^T  remains.  W_hh^T is DMA'd once into
#   a persistent single-buffered VMEM scratch.  h/c carried in f32 VMEM.
#   Grid = (batch shards, time chunks); PyTorch gate ordering [i, f, g, o].
# --------------------------------------------------------------------------
def _lstm_recurrence_kernel(gates_ref, whh_hbm, h0_ref, c0_ref,
                            out_ref, hn_ref, cn_ref,
                            whh_vmem, whh_sem, h_sc, c_sc,
                            *, chunk_size, seq_len, hidden_size, apply_mask):
    chunk = pl.program_id(1)

    @pl.when(chunk == 0)
    def _():
        # Single-buffered resident W_hh^T: one HBM->VMEM DMA, scratch persists
        # across all time chunks (halves VMEM vs. a double-buffered input).
        cp = pltpu.make_async_copy(whh_hbm, whh_vmem, whh_sem)
        cp.start()
        h_sc[...] = h0_ref[...]
        c_sc[...] = c0_ref[...]
        cp.wait()

    whh = whh_vmem[...]                       # (H, 4H) bf16, resident
    H = hidden_size
    t0 = chunk * chunk_size

    def step(t, carry):
        h, c = carry                          # f32 (B_shard, H) carries
        g = (jnp.dot(h.astype(whh.dtype), whh,
                     preferred_element_type=jnp.float32)
             + gates_ref[t].astype(jnp.float32))
        # Consume each gate slab immediately to limit live vregs at large H.
        c_new = jax.nn.sigmoid(g[:, 1 * H:2 * H]) * c                      # f*c
        c_new = c_new + (jax.nn.sigmoid(g[:, 0 * H:1 * H])
                         * jnp.tanh(g[:, 2 * H:3 * H]))                    # +i*g
        h_new = jax.nn.sigmoid(g[:, 3 * H:4 * H]) * jnp.tanh(c_new)
        if apply_mask:
            # Freeze the carried state on padded (t >= seq_len) timesteps so
            # h_n / c_n stay exact; padded outputs hold the frozen h and are
            # sliced off / masked by downstream layers anyway.
            valid = (t0 + t) < seq_len
            h_new = jnp.where(valid, h_new, h)
            c_new = jnp.where(valid, c_new, c)
        out_ref[t] = h_new
        return (h_new, c_new)

    h, c = lax.fori_loop(0, chunk_size, step, (h_sc[...], c_sc[...]),
                         unroll=True)
    h_sc[...] = h
    c_sc[...] = c

    # Only write the resident h_n / c_n accumulators on the last chunk.
    @pl.when(chunk == pl.num_programs(1) - 1)
    def _():
        hn_ref[...] = h_sc[...]
        cn_ref[...] = c_sc[...]


def _lstm_recurrence(gates, whh_t, h0, c0, *, seq_len, chunk_size,
                     hidden_size, n_bshards):
    """gates: (T_pad, B_pad, 4H) bf16; whh_t: (H, 4H) bf16; h0/c0: (B_pad, H).
    Returns padded (out (T_pad,B_pad,H), h_n (B_pad,H), c_n (B_pad,H))."""
    T_pad, B_pad, _ = gates.shape
    H = hidden_size
    B_shard = B_pad // n_bshards
    n_chunks = T_pad // chunk_size
    apply_mask = (T_pad != seq_len)

    kernel = functools.partial(
        _lstm_recurrence_kernel, chunk_size=chunk_size, seq_len=seq_len,
        hidden_size=H, apply_mask=apply_mask)

    out_shapes = (
        jax.ShapeDtypeStruct((T_pad, B_pad, H), jnp.float32),
        jax.ShapeDtypeStruct((B_pad, H), jnp.float32),
        jax.ShapeDtypeStruct((B_pad, H), jnp.float32),
    )
    grid_spec = pltpu.PrefetchScalarGridSpec(
        num_scalar_prefetch=0,
        grid=(n_bshards, n_chunks),
        in_specs=[
            pl.BlockSpec((chunk_size, B_shard, 4 * H), lambda b, t: (t, b, 0)),
            pl.BlockSpec(memory_space=pl.ANY),      # W_hh^T stays in HBM
            pl.BlockSpec((B_shard, H), lambda b, t: (b, 0)),
            pl.BlockSpec((B_shard, H), lambda b, t: (b, 0)),
        ],
        out_specs=[
            pl.BlockSpec((chunk_size, B_shard, H), lambda b, t: (t, b, 0)),
            pl.BlockSpec((B_shard, H), lambda b, t: (b, 0)),
            pl.BlockSpec((B_shard, H), lambda b, t: (b, 0)),
        ],
        scratch_shapes=[
            pltpu.VMEM(whh_t.shape, jnp.bfloat16),  # single-buffered W_hh^T
            pltpu.SemaphoreType.DMA(()),
            pltpu.VMEM((B_shard, H), jnp.float32),
            pltpu.VMEM((B_shard, H), jnp.float32),
        ],
    )
    outputs, h_n, c_n = pl.pallas_call(
        kernel,
        out_shape=out_shapes,
        grid_spec=grid_spec,
        compiler_params=pltpu.CompilerParams(
            dimension_semantics=("parallel", "arbitrary"),  # batch || , time seq
            vmem_limit_bytes=_GEN["vmem_limit"]),
    )(gates, whh_t, h0, c0)
    return outputs, h_n, c_n


def lstm_stack(x, layers, h0_all, c0_all, *, chunk_size=None):
    """Runs the nlayers LSTM over (T, B, E) input.  Activations are carried
    batch/time padded across layers; the (T, B) slice happens once at the end.
    Returns (output (T,B,H), h_n (nlayers,B,H), c_n (nlayers,B,H))."""
    T, B, E = x.shape
    nlayers = len(layers)
    H = layers[0]["hidden_size"]
    Tc = min(chunk_size if chunk_size else _GEN["chunk"], T)
    T_pad = _round_up(T, Tc)
    B_pad = max(8, _round_up(B, 8))
    # Split the batch across TensorCores (v7x megacore) when it is big enough;
    # B_pad % 32 keeps the bf16 gates blocks (16,128)-packing aligned.
    n_bshards = 2 if (_GEN["cores"] >= 2 and B_pad >= 32
                      and B_pad % 32 == 0) else 1

    x_p = x
    if (T_pad, B_pad) != (T, B):
        x_p = jnp.zeros((T_pad, B_pad, E), x.dtype).at[:T, :B, :].set(x)
    h0_p = jnp.zeros((nlayers, B_pad, H), jnp.float32).at[:, :B, :].set(h0_all)
    c0_p = jnp.zeros((nlayers, B_pad, H), jnp.float32).at[:, :B, :].set(c0_all)

    h_ns, c_ns = [], []
    for l, lw in enumerate(layers):
        E_l = x_p.shape[-1]
        # Hoisted input projection for the whole (padded) sequence, emitted in
        # bf16: halves the gates HBM traffic.  The carry stays f32 in-kernel.
        gates = linear(x_p.reshape(T_pad * B_pad, E_l), lw["ih"],
                       out_dtype=jnp.bfloat16).reshape(T_pad, B_pad, 4 * H)
        x_p, h_n, c_n = _lstm_recurrence(
            gates, lw["whh_t"], h0_p[l], c0_p[l],
            seq_len=T, chunk_size=Tc, hidden_size=H, n_bshards=n_bshards)
        h_ns.append(h_n[:B])
        c_ns.append(c_n[:B])
        # TODO(synk): inter-layer dropout (training mode) not implemented
        # (eval/inference semantics -> identity).

    output = x_p if (T_pad, B_pad) == (T, B) else x_p[:T, :B, :]
    return output, jnp.stack(h_ns, axis=0), jnp.stack(c_ns, axis=0)


# --------------------------------------------------------------------------
# LanguageModel forward (wrapper around the Pallas kernels).
# --------------------------------------------------------------------------
def language_model_forward(prepared, input_ids, hidden, *, chunk_size=None):
    """input_ids: (T, B) int32; hidden = (h0, c0) each (nlayers, B, H)."""
    h0_all, c0_all = hidden

    # encoder (embedding gather) + dropout(eval -> identity); plain-JAX glue.
    emb = jnp.take(prepared["encoder_weight"], input_ids, axis=0)   # (T, B, E)

    output, h_n, c_n = lstm_stack(emb, prepared["lstm_layers"],
                                  h0_all, c0_all, chunk_size=chunk_size)

    # proj is None (nout=None) -> skipped; dropout(eval) -> identity.
    T, B, H = output.shape
    decoded = linear(output.reshape(T * B, H), prepared["decoder"])
    decoded = decoded.reshape(T, B, -1)
    return decoded, output, (h_n, c_n)


# --------------------------------------------------------------------------
# Parameter initialization (mirrors module __init__ shapes) and one-time
# weight preparation for the Pallas kernels.
# --------------------------------------------------------------------------
def init_params(key, vocab_size, embedding_size, hidden_size, nlayers):
    keys = jax.random.split(key, 4 + 4 * nlayers)
    initrange = 0.1
    stdv = 1.0 / math.sqrt(hidden_size)
    params = {
        "encoder_weight": jax.random.uniform(
            keys[0], (vocab_size, embedding_size), jnp.float32,
            -initrange, initrange),
        "decoder_weight": jax.random.uniform(
            keys[1], (vocab_size, hidden_size), jnp.float32,
            -initrange, initrange),
        "decoder_bias": jnp.zeros((vocab_size,), jnp.float32),
        "lstm_layers": [],
    }
    for l in range(nlayers):
        in_size = embedding_size if l == 0 else hidden_size
        k = keys[4 + 4 * l: 8 + 4 * l]
        params["lstm_layers"].append({
            "w_ih": jax.random.uniform(k[0], (4 * hidden_size, in_size),
                                       jnp.float32, -stdv, stdv),
            "w_hh": jax.random.uniform(k[1], (4 * hidden_size, hidden_size),
                                       jnp.float32, -stdv, stdv),
            "b_ih": jax.random.uniform(k[2], (4 * hidden_size,),
                                       jnp.float32, -stdv, stdv),
            "b_hh": jax.random.uniform(k[3], (4 * hidden_size,),
                                       jnp.float32, -stdv, stdv),
        })
    return params


def prepare_params(params):
    """One-time weight preparation (transpose / pad / bf16 cast) so that the
    forward pass never re-materializes weight copies in HBM."""
    prepared = {
        "encoder_weight": params["encoder_weight"],
        "decoder": prepare_linear(params["decoder_weight"],
                                  params["decoder_bias"]),
        "lstm_layers": [],
    }
    for lw in params["lstm_layers"]:
        prepared["lstm_layers"].append({
            # fused input projection: x @ W_ih^T + (b_ih + b_hh)
            "ih": prepare_linear(lw["w_ih"], lw["b_ih"] + lw["b_hh"]),
            "whh_t": jnp.transpose(lw["w_hh"]).astype(jnp.bfloat16),   # (H,4H)
            "hidden_size": lw["w_hh"].shape[1],
        })
    return prepared


# --------------------------------------------------------------------------
# Pure-JAX f32 reference (sanity check of the Pallas kernels).
# --------------------------------------------------------------------------
def reference_forward(params, input_ids, hidden):
    h0_all, c0_all = hidden
    emb = jnp.take(params["encoder_weight"], input_ids, axis=0)
    x = emb
    h_ns, c_ns = [], []
    for l, lw in enumerate(params["lstm_layers"]):
        H = lw["w_hh"].shape[1]

        def step(carry, x_t, lw=lw, H=H):
            h, c = carry
            gates = (x_t @ lw["w_ih"].T + h @ lw["w_hh"].T
                     + lw["b_ih"] + lw["b_hh"])
            i = jax.nn.sigmoid(gates[:, 0 * H:1 * H])
            f = jax.nn.sigmoid(gates[:, 1 * H:2 * H])
            g = jnp.tanh(gates[:, 2 * H:3 * H])
            o = jax.nn.sigmoid(gates[:, 3 * H:4 * H])
            c = f * c + i * g
            h = o * jnp.tanh(c)
            return (h, c), h

        (h_n, c_n), outs = jax.lax.scan(step, (h0_all[l], c0_all[l]), x)
        x = outs
        h_ns.append(h_n)
        c_ns.append(c_n)
    T, B, H = x.shape
    dec = (x.reshape(T * B, H) @ params["decoder_weight"].T
           + params["decoder_bias"]).reshape(T, B, -1)
    return dec, x, (jnp.stack(h_ns), jnp.stack(c_ns))


if __name__ == "__main__":
    # Small shapes: vocab=40, embedding=32, hidden=32, nlayers=2, T=10, B=2.
    VOCAB, EMB, HID, NLAYERS, T, B = 40, 32, 32, 2, 10, 2

    key = jax.random.PRNGKey(0)
    pkey, ikey = jax.random.split(key)
    params = init_params(pkey, VOCAB, EMB, HID, NLAYERS)
    prepared = prepare_params(params)

    input_ids = jax.random.randint(ikey, (T, B), 0, VOCAB, dtype=jnp.int32)
    # init_hidden(bsz): zeros of shape (nlayers, B, H)
    hidden = (jnp.zeros((NLAYERS, B, HID), jnp.float32),
              jnp.zeros((NLAYERS, B, HID), jnp.float32))

    d_ref, o_ref, h_ref = reference_forward(params, input_ids, hidden)

    # chunk_size=4 exercises the multi-chunk carry + time-mask path;
    # chunk_size=None exercises the generation-aware default path.
    for cs in (4, None):
        decoded, output, hidden_out = language_model_forward(
            prepared, input_ids, hidden, chunk_size=cs)
        jax.block_until_ready((decoded, output, hidden_out))
        np.testing.assert_allclose(np.asarray(decoded), np.asarray(d_ref),
                                   rtol=2e-2, atol=2e-2)
        np.testing.assert_allclose(np.asarray(output), np.asarray(o_ref),
                                   rtol=2e-2, atol=2e-2)
        np.testing.assert_allclose(np.asarray(hidden_out[0]),
                                   np.asarray(h_ref[0]), rtol=2e-2, atol=2e-2)
        np.testing.assert_allclose(np.asarray(hidden_out[1]),
                                   np.asarray(h_ref[1]), rtol=2e-2, atol=2e-2)

    print("KERNEL_OK")
</pallas_src>

<mosaic_0001>
module attributes {stable_mosaic.version = 11 : i64} {
  func.func @_linear_kernel(%arg0: i32, %arg1: i32, %arg2: i32, %arg3: memref<96x128xf32, #tpu.memory_space<vmem>>, %arg4: memref<128x128xbf16, #tpu.memory_space<vmem>>, %arg5: memref<1x128xf32, #tpu.memory_space<vmem>>, %arg6: memref<96x128xbf16, #tpu.memory_space<vmem>>, %arg7: memref<96x128xf32, #tpu.memory_space<vmem>>) attributes {dimension_semantics = [#tpu.dimension_semantics<parallel>, #tpu.dimension_semantics<parallel>, #tpu.dimension_semantics<arbitrary>], iteration_bounds = array<i64: 1, 1, 1>, scalar_prefetch = 0 : i64, scratch_operands = 1 : i64, tpu.core_type = #tpu.core_type<tc>, window_params = [{transform_indices = @transform_0, window_bounds = array<i64: 96, 128>}, {transform_indices = @transform_1, window_bounds = array<i64: 128, 128>}, {transform_indices = @transform_2, window_bounds = array<i64: 1, 128>}, {transform_indices = @transform_3, window_bounds = array<i64: 96, 128>}]} {
    %c0_i32 = arith.constant 0 : i32
    %0 = arith.cmpi eq, %arg2, %c0_i32 : i32
    %1 = arith.extui %0 : i1 to i32
    %c0_i32_0 = arith.constant 0 : i32
    %2 = arith.cmpi ne, %1, %c0_i32_0 : i32
    scf.if %2 {
      %cst_10 = arith.constant 0.000000e+00 : f32
      %13 = vector.broadcast %cst_10 : f32 to vector<96x128xf32>
      %c0_11 = arith.constant 0 : index
      %c0_12 = arith.constant 0 : index
      %14 = vector.load %arg7[%c0_11, %c0_12] : memref<96x128xf32, #tpu.memory_space<vmem>>, vector<96x128xf32>
      tpu.vector_store %arg7[%c0_11, %c0_12], %13 {strides = array<i32>} : memref<96x128xf32, #tpu.memory_space<vmem>>, vector<96x128xf32>,
    } else {
    }
    %c0 = arith.constant 0 : index
    %c0_1 = arith.constant 0 : index
    %3 = vector.load %arg7[%c0, %c0_1] : memref<96x128xf32, #tpu.memory_space<vmem>>, vector<96x128xf32>
    %c0_2 = arith.constant 0 : index
    %c0_3 = arith.constant 0 : index
    %4 = vector.load %arg3[%c0_2, %c0_3] : memref<96x128xf32, #tpu.memory_space<vmem>>, vector<96x128xf32>
    %5 = arith.truncf %4 : vector<96x128xf32> to vector<96x128xbf16>
    %c0_4 = arith.constant 0 : index
    %c0_5 = arith.constant 0 : index
    %6 = vector.load %arg4[%c0_4, %c0_5] : memref<128x128xbf16, #tpu.memory_space<vmem>>, vector<128x128xbf16>
    %cst = arith.constant dense<0.000000e+00> : vector<96x128xf32>
    %7 = tpu.matmul %5, %6, %cst {dimension_numbers = #tpu.dot_dimension_numbers<[1], [0], [0], [1], [0, 0, 1, 1], [], []>} : vector<96x128xbf16>, vector<128x128xbf16>, vector<96x128xf32> -> vector<96x128xf32>
    %8 = arith.addf %3, %7 : vector<96x128xf32>
    %c0_6 = arith.constant 0 : index
    %c0_7 = arith.constant 0 : index
    %9 = vector.load %arg7[%c0_6, %c0_7] : memref<96x128xf32, #tpu.memory_space<vmem>>, vector<96x128xf32>
    tpu.vector_store %arg7[%c0_6, %c0_7], %8 {strides = array<i32>} : memref<96x128xf32, #tpu.memory_space<vmem>>, vector<96x128xf32>,
    %c0_i32_8 = arith.constant 0 : i32
    %10 = arith.cmpi eq, %arg2, %c0_i32_8 : i32
    %11 = arith.extui %10 : i1 to i32
    %c0_i32_9 = arith.constant 0 : i32
    %12 = arith.cmpi ne, %11, %c0_i32_9 : i32
    scf.if %12 {
      %c0_10 = arith.constant 0 : index
      %c0_11 = arith.constant 0 : index
      %13 = vector.load %arg7[%c0_10, %c0_11] : memref<96x128xf32, #tpu.memory_space<vmem>>, vector<96x128xf32>
      %c0_12 = arith.constant 0 : index
      %c0_13 = arith.constant 0 : index
      %14 = vector.load %arg5[%c0_12, %c0_13] : memref<1x128xf32, #tpu.memory_space<vmem>>, vector<1x128xf32>
      %15 = vector.broadcast %14 : vector<1x128xf32> to vector<96x128xf32>
      %16 = arith.addf %13, %15 : vector<96x128xf32>
      %17 = arith.truncf %16 : vector<96x128xf32> to vector<96x128xbf16>
      %c0_14 = arith.constant 0 : index
      %c0_15 = arith.constant 0 : index
      %18 = vector.load %arg6[%c0_14, %c0_15] : memref<96x128xbf16, #tpu.memory_space<vmem>>, vector<96x128xbf16>
      tpu.vector_store %arg6[%c0_14, %c0_15], %17 {strides = array<i32>} : memref<96x128xbf16, #tpu.memory_space<vmem>>, vector<96x128xbf16>,
    } else {
    }
    return
  }
  func.func @transform_0(%arg0: i32, %arg1: i32, %arg2: i32) -> (i32, i32) {
    %c0_i32 = arith.constant 0 : i32
    return %arg0, %arg2 : i32, i32
  }
  func.func @transform_1(%arg0: i32, %arg1: i32, %arg2: i32) -> (i32, i32) {
    %c0_i32 = arith.constant 0 : i32
    return %arg2, %arg1 : i32, i32
  }
  func.func @transform_2(%arg0: i32, %arg1: i32, %arg2: i32) -> (i32, i32) {
    %c0_i32 = arith.constant 0 : i32
    %c0_i32_0 = arith.constant 0 : i32
    return %c0_i32, %arg1 : i32, i32
  }
  func.func @transform_3(%arg0: i32, %arg1: i32, %arg2: i32) -> (i32, i32) {
    %c0_i32 = arith.constant 0 : i32
    return %arg0, %arg1 : i32, i32
  }
}

</mosaic_0001>

<llo_original>
// kernel: tpu_custom_call.1
$region0: #{tpu_custom_call.1}
  #allocation0 [shape = 'u32[]', space=smem, size = 0x4, offset = 0x4, fixed_abs, tag = 'smem constant byte address 0x4 - core index']
  #allocation1 [shape = 'u32[72,128]{1,0:T(1,128)}', space=vmem, size = 0x9000, scoped, tag = 'internal scratch']
  #allocation2 [shape = 'f32[96,128]{1,0:T(8,128)}', space=vmem, size = 0xc000, scoped, tag = 'scratch operand']
  %s0 = inlined_call_operand.hbm [shape: f32[96,128], index: 0, kind: input, shape index: {}]
  %s1 = inlined_call_operand.hbm [shape: bf16[128,128], index: 1, kind: input, shape index: {}]
  %s2 = inlined_call_operand.vmem [shape: f32[1,128], index: 2, kind: input, shape index: {}]
  %s3 = inlined_call_operand.hbm [shape: bf16[96,128], index: 3, kind: output, shape index: {}]
  %s4 = sld [smem:[#allocation0]]
  $region38: #{tpu_custom_call.1} parent=0
    _
  %s6 = ssub.s32 1, %s4
  %s7 = scalar_select 0, %s6, %s4
  $region1: #{tpu_custom_call.1} parent=0
    #allocation3 [shape = 'u8[49152]{0}', space=vmem, size = 0xc000, scoped, tag = 'input window, operand 0, single buffered']
    #allocation4 [shape = 's32[1]{0}', space=sflag, size = 0x4, scoped, tag = 'scoped memory for tpu_custom_call.1']
    #allocation5 [shape = 's32[1]{0}', space=sflag, size = 0x4, scoped, tag = 'scoped memory for tpu_custom_call.1']
    #allocation6 [shape = 'u8[32768]{0}', space=vmem, size = 0x8000, scoped, tag = 'input window, operand 1, single buffered']
    #allocation7 [shape = 's32[1]{0}', space=sflag, size = 0x4, scoped, tag = 'scoped memory for tpu_custom_call.1']
    #allocation8 [shape = 'u8[24576]{0}', space=vmem, size = 0x6000, scoped, tag = 'output window, operand 0, single buffered']
    %8 = vsyncpa [#allocation4], 0
    %9 = vsyncpa [#allocation7], 0
    %10 = vsyncpa [#allocation5], 0
    // Predicated region
    $region2: #{tpu_custom_call.1} parent=1 // pred_check
      _
    $region3: #{tpu_custom_call.1} parent=1 // pred_check_branch
      %12 = sbr.rel (0) target = $region5
    $region4: #{tpu_custom_call.1} parent=1 // pred_region
      %14 = vsyncadd [#allocation4], 0
      %s15 = sshll.u32 %s0, 4
      %s16 = int_to_ptr.hbm [resolvable:$true] %s15
      %s17 = sshll.u32 [#allocation3], 4
      %s18 = int_to_ptr.vmem [resolvable:$true] %s17
      %23 = dma.hbm_to_vmem [thread:$0]  %s16, 1536, %s18, [#allocation4], 128, 128, 8
    $region5: #{tpu_custom_call.1} parent=1 // pred_fallthru
      _
    // Predicated region
    $region6: #{tpu_custom_call.1} parent=1 // pred_check
      _
    $region7: #{tpu_custom_call.1} parent=1 // pred_check_branch
      %25 = sbr.rel (0) target = $region9
    $region8: #{tpu_custom_call.1} parent=1 // pred_region
      %27 = vsyncadd [#allocation7], 0
      %s28 = sshll.u32 %s1, 4
      %s29 = int_to_ptr.hbm [resolvable:$true] %s28
      %s30 = sshll.u32 [#allocation6], 4
      %s31 = int_to_ptr.vmem [resolvable:$true] %s30
      %36 = dma.hbm_to_vmem [thread:$0]  %s29, 1024, %s31, [#allocation7], 64, 64, 4
    $region9: #{tpu_custom_call.1} parent=1 // pred_fallthru
      _
    // Predicated region
    $region10: #{tpu_custom_call.1} parent=1 // pred_check
      _
    $region11: #{tpu_custom_call.1} parent=1 // pred_check_branch
      %38 = sbr.rel (0) target = $region13
    $region12: #{tpu_custom_call.1} parent=1 // pred_region
      _
    $region13: #{tpu_custom_call.1} parent=1 // pred_fallthru
      _
    // Predicated region
    $region14: #{tpu_custom_call.1} parent=1 // pred_check
      _
    $region15: #{tpu_custom_call.1} parent=1 // pred_check_branch
      %40 = sbr.rel (0) target = $region17
    $region16: #{tpu_custom_call.1} parent=1 // pred_region
      %42 = dma.done [#allocation4], 1536
    $region17: #{tpu_custom_call.1} parent=1 // pred_fallthru
      _
    // Predicated region
    $region18: #{tpu_custom_call.1} parent=1 // pred_check
      _
    $region19: #{tpu_custom_call.1} parent=1 // pred_check_branch
      %44 = sbr.rel (0) target = $region21
    $region20: #{tpu_custom_call.1} parent=1 // pred_region
      %46 = dma.done [#allocation7], 1024
    $region21: #{tpu_custom_call.1} parent=1 // pred_fallthru
      _
    %p47 = scmp.eq.s32.totalorder 0, 0
    // Predicated region
    $region22: #{tpu_custom_call.1} parent=1 // pred_check
      %p48 = pneg %p47
    $region23: #{tpu_custom_call.1} parent=1 // pred_check_branch
      %50 = sbr.rel (%p48) target = $region25
    $region24: #{tpu_custom_call.1} parent=1 // pred_region
      %51 = vst [vmem:[#allocation2] sm:$0xff] 0.0
      %52 = vst [vmem:[#allocation2 + $0x8] sm:$0xff] 0.0
      %53 = vst [vmem:[#allocation2 + $0x10] sm:$0xff] 0.0
      %54 = vst [vmem:[#allocation2 + $0x18] sm:$0xff] 0.0
      %55 = vst [vmem:[#allocation2 + $0x20] sm:$0xff] 0.0
      %56 = vst [vmem:[#allocation2 + $0x28] sm:$0xff] 0.0
      %57 = vst [vmem:[#allocation2 + $0x30] sm:$0xff] 0.0
      %58 = vst [vmem:[#allocation2 + $0x38] sm:$0xff] 0.0
      %59 = vst [vmem:[#allocation2 + $0x40] sm:$0xff] 0.0
      %60 = vst [vmem:[#allocation2 + $0x48] sm:$0xff] 0.0
      %61 = vst [vmem:[#allocation2 + $0x50] sm:$0xff] 0.0
      %62 = vst [vmem:[#allocation2 + $0x58] sm:$0xff] 0.0
    $region25: #{tpu_custom_call.1} parent=1 // pred_fallthru
      _
    %v63 = vld [vmem:[#allocation2] sm:$0xff]
    %v64 = vld [vmem:[#allocation2 + $0x8] sm:$0xff]
    %v65 = vld [vmem:[#allocation2 + $0x10] sm:$0xff]
    %v66 = vld [vmem:[#allocation2 + $0x18] sm:$0xff]
    %v67 = vld [vmem:[#allocation2 + $0x20] sm:$0xff]
    %v68 = vld [vmem:[#allocation2 + $0x28] sm:$0xff]
    %v69 = vld [vmem:[#allocation2 + $0x30] sm:$0xff]
    %v70 = vld [vmem:[#allocation2 + $0x38] sm:$0xff]
    %v71 = vld [vmem:[#allocation2 + $0x40] sm:$0xff]
    %v72 = vld [vmem:[#allocation2 + $0x48] sm:$0xff]
    %v73 = vld [vmem:[#allocation2 + $0x50] sm:$0xff]
    %v74 = vld [vmem:[#allocation2 + $0x58] sm:$0xff]
    %v75 = vld [vmem:[#allocation3] sm:$0xff]
    %v76 = vld [vmem:[#allocation3 + $0x8] sm:$0xff]
    %v77 = vld [vmem:[#allocation3 + $0x10] sm:$0xff]
    %v78 = vld [vmem:[#allocation3 + $0x18] sm:$0xff]
    %v79 = vld [vmem:[#allocation3 + $0x20] sm:$0xff]
    %v80 = vld [vmem:[#allocation3 + $0x28] sm:$0xff]
    %v81 = vld [vmem:[#allocation3 + $0x30] sm:$0xff]
    %v82 = vld [vmem:[#allocation3 + $0x38] sm:$0xff]
    %v83 = vld [vmem:[#allocation3 + $0x40] sm:$0xff]
    %v84 = vld [vmem:[#allocation3 + $0x48] sm:$0xff]
    %v85 = vld [vmem:[#allocation3 + $0x50] sm:$0xff]
    %v86 = vld [vmem:[#allocation3 + $0x58] sm:$0xff]
    %v87 = vpack.c.bf16 %v76, %v75
    %v88 = vpack.c.bf16 %v78, %v77
    %v89 = vpack.c.bf16 %v80, %v79
    %v90 = vpack.c.bf16 %v82, %v81
    %v91 = vpack.c.bf16 %v84, %v83
    %v92 = vpack.c.bf16 %v86, %v85
    %v93 = vld [vmem:[#allocation6] sm:$0xf]
    %v94 = vld [vmem:[#allocation6 + $0x4] sm:$0xf]
    %v95 = vld [vmem:[#allocation6 + $0x8] sm:$0xf]
    %v96 = vld [vmem:[#allocation6 + $0xc] sm:$0xf]
    %v97 = vld [vmem:[#allocation6 + $0x10] sm:$0xf]
    %v98 = vld [vmem:[#allocation6 + $0x14] sm:$0xf]
    %v99 = vld [vmem:[#allocation6 + $0x18] sm:$0xf]
    %v100 = vld [vmem:[#allocation6 + $0x1c] sm:$0xf]
    %v101 = vld [vmem:[#allocation6 + $0x20] sm:$0xf]
    %v102 = vld [vmem:[#allocation6 + $0x24] sm:$0xf]
    %v103 = vld [vmem:[#allocation6 + $0x28] sm:$0xf]
    %v104 = vld [vmem:[#allocation6 + $0x2c] sm:$0xf]
    %v105 = vld [vmem:[#allocation6 + $0x30] sm:$0xf]
    %v106 = vld [vmem:[#allocation6 + $0x34] sm:$0xf]
    %v107 = vld [vmem:[#allocation6 + $0x38] sm:$0xf]
    %v108 = vld [vmem:[#allocation6 + $0x3c] sm:$0xf]
    %v125 = vunpack.c.l.b16 %v93
    %v126 = vunpack.c.l.b16 %v94
    %v127 = vunpack.c.l.b16 %v95
    %v128 = vunpack.c.l.b16 %v96
    %v129 = vunpack.c.l.b16 %v97
    %v130 = vunpack.c.l.b16 %v98
    %v131 = vunpack.c.l.b16 %v99
    %v132 = vunpack.c.l.b16 %v100
    %v133 = vunpack.c.l.b16 %v101
    %v134 = vunpack.c.l.b16 %v102
    %v135 = vunpack.c.l.b16 %v103
    %v136 = vunpack.c.l.b16 %v104
    %v137 = vunpack.c.l.b16 %v105
    %v138 = vunpack.c.l.b16 %v106
    %v139 = vunpack.c.l.b16 %v107
    %v140 = vunpack.c.l.b16 %v108
    %v141 = vpack.c.b16 %v126, %v125
    %v142 = vpack.c.b16 %v128, %v127
    %v143 = vpack.c.b16 %v130, %v129
    %v144 = vpack.c.b16 %v132, %v131
    %v145 = vpack.c.b16 %v134, %v133
    %v146 = vpack.c.b16 %v136, %v135
    %v147 = vpack.c.b16 %v138, %v137
    %v148 = vpack.c.b16 %v140, %v139
    %157 = vmatpush.bf16.msra.mxu0 %v148
    %158 = vmatpush.bf16.msra.mxu0 %v147
    %159 = vmatpush.bf16.msra.mxu0 %v146
    %160 = vmatpush.bf16.msra.mxu0 %v145
    %161 = vmatpush.bf16.msra.mxu0 %v144
    %162 = vmatpush.bf16.msra.mxu0 %v143
    %163 = vmatpush.bf16.msra.mxu0 %v142
    %164 = vmatpush.bf16.msra.mxu0 %v141
    %165 = vmatmul.bf16.gmra.mxu0 %v87
    %v166 = vpop.f32.mrf.mxu0
    %v167 = vadd.f32 0.0, %v166
    %v168 = vpop.f32.mrf.mxu0
    %v169 = vadd.f32 0.0, %v168
    %170 = vmatmul.bf16.gmra.mxu0 %v88
    %v171 = vpop.f32.mrf.mxu0
    %v172 = vadd.f32 0.0, %v171
    %v173 = vpop.f32.mrf.mxu0
    %v174 = vadd.f32 0.0, %v173
    %175 = vmatmul.bf16.gmra.mxu0 %v89
    %v176 = vpop.f32.mrf.mxu0
    %v177 = vadd.f32 0.0, %v176
    %v178 = vpop.f32.mrf.mxu0
    %v179 = vadd.f32 0.0, %v178
    %180 = vmatmul.bf16.gmra.mxu0 %v90
    %v181 = vpop.f32.mrf.mxu0
    %v182 = vadd.f32 0.0, %v181
    %v183 = vpop.f32.mrf.mxu0
    %v184 = vadd.f32 0.0, %v183
    %185 = vmatmul.bf16.gmra.mxu0 %v91
    %v186 = vpop.f32.mrf.mxu0
    %v187 = vadd.f32 0.0, %v186
    %v188 = vpop.f32.mrf.mxu0
    %v189 = vadd.f32 0.0, %v188
    %190 = vmatmul.bf16.gmra.mxu0 %v92
    %v191 = vpop.f32.mrf.mxu0
    %v192 = vadd.f32 0.0, %v191
    %v193 = vpop.f32.mrf.mxu0
    %v194 = vadd.f32 0.0, %v193
    %195 = vdwg.mxu0
    %v196 = vadd.f32 %v63, %v167
    %v197 = vadd.f32 %v64, %v169
    %v198 = vadd.f32 %v65, %v172
    %v199 = vadd.f32 %v66, %v174
    %v200 = vadd.f32 %v67, %v177
    %v201 = vadd.f32 %v68, %v179
    %v202 = vadd.f32 %v69, %v182
    %v203 = vadd.f32 %v70, %v184
    %v204 = vadd.f32 %v71, %v187
    %v205 = vadd.f32 %v72, %v189
    %v206 = vadd.f32 %v73, %v192
    %v207 = vadd.f32 %v74, %v194
    %208 = vst [vmem:[#allocation2] sm:$0xff] %v196
    %209 = vst [vmem:[#allocation2 + $0x8] sm:$0xff] %v197
    %210 = vst [vmem:[#allocation2 + $0x10] sm:$0xff] %v198
    %211 = vst [vmem:[#allocation2 + $0x18] sm:$0xff] %v199
    %212 = vst [vmem:[#allocation2 + $0x20] sm:$0xff] %v200
    %213 = vst [vmem:[#allocation2 + $0x28] sm:$0xff] %v201
    %214 = vst [vmem:[#allocation2 + $0x30] sm:$0xff] %v202
    %215 = vst [vmem:[#allocation2 + $0x38] sm:$0xff] %v203
    %216 = vst [vmem:[#allocation2 + $0x40] sm:$0xff] %v204
    %217 = vst [vmem:[#allocation2 + $0x48] sm:$0xff] %v205
    %218 = vst [vmem:[#allocation2 + $0x50] sm:$0xff] %v206
    %219 = vst [vmem:[#allocation2 + $0x58] sm:$0xff] %v207
    // Predicated region
    $region26: #{tpu_custom_call.1} parent=1 // pred_check
      %p220 = pneg %p47
    $region27: #{tpu_custom_call.1} parent=1 // pred_check_branch
      %222 = sbr.rel (%p220) target = $region29
    $region28: #{tpu_custom_call.1} parent=1 // pred_region
      %v223 = vld [vmem:[#allocation2] sm:$0xff]
      %v224 = vld [vmem:[#allocation2 + $0x8] sm:$0xff]
      %v225 = vld [vmem:[#allocation2 + $0x10] sm:$0xff]
      %v226 = vld [vmem:[#allocation2 + $0x18] sm:$0xff]
      %v227 = vld [vmem:[#allocation2 + $0x20] sm:$0xff]
      %v228 = vld [vmem:[#allocation2 + $0x28] sm:$0xff]
      %v229 = vld [vmem:[#allocation2 + $0x30] sm:$0xff]
      %v230 = vld [vmem:[#allocation2 + $0x38] sm:$0xff]
      %v231 = vld [vmem:[#allocation2 + $0x40] sm:$0xff]
      %v232 = vld [vmem:[#allocation2 + $0x48] sm:$0xff]
      %v233 = vld [vmem:[#allocation2 + $0x50] sm:$0xff]
      %v234 = vld [vmem:[#allocation2 + $0x58] sm:$0xff]
      %v235 = vld [vmem:[%s2] sm:$0x1]
      %v237 = vperm.slane %v235, 0
      %v239 = vadd.f32 %v223, %v237
      %v240 = vadd.f32 %v224, %v237
      %v241 = vadd.f32 %v225, %v237
      %v242 = vadd.f32 %v226, %v237
      %v243 = vadd.f32 %v227, %v237
      %v244 = vadd.f32 %v228, %v237
      %v245 = vadd.f32 %v229, %v237
      %v246 = vadd.f32 %v230, %v237
      %v247 = vadd.f32 %v231, %v237
      %v248 = vadd.f32 %v232, %v237
      %v249 = vadd.f32 %v233, %v237
      %v250 = vadd.f32 %v234, %v237
      %v251 = vpack.c.bf16 %v239, %v239
      %v252 = vpack.c.bf16 %v240, %v240
      %v253 = vpack.c.bf16 %v241, %v241
      %v254 = vpack.c.bf16 %v242, %v242
      %v255 = vpack.c.bf16 %v243, %v243
      %v256 = vpack.c.bf16 %v244, %v244
      %v257 = vpack.c.bf16 %v245, %v245
      %v258 = vpack.c.bf16 %v246, %v246
      %v259 = vpack.c.bf16 %v247, %v247
      %v260 = vpack.c.bf16 %v248, %v248
      %v261 = vpack.c.bf16 %v249, %v249
      %v262 = vpack.c.bf16 %v250, %v250
      %263 = vst [vmem:[#allocation8] sm:$0xf] %v251
      %264 = vst [vmem:[#allocation8 + $0x4] sm:$0xf] %v252
      %265 = vst [vmem:[#allocation8 + $0x8] sm:$0xf] %v253
      %266 = vst [vmem:[#allocation8 + $0xc] sm:$0xf] %v254
      %267 = vst [vmem:[#allocation8 + $0x10] sm:$0xf] %v255
      %268 = vst [vmem:[#allocation8 + $0x14] sm:$0xf] %v256
      %269 = vst [vmem:[#allocation8 + $0x18] sm:$0xf] %v257
      %270 = vst [vmem:[#allocation8 + $0x1c] sm:$0xf] %v258
      %271 = vst [vmem:[#allocation8 + $0x20] sm:$0xf] %v259
      %272 = vst [vmem:[#allocation8 + $0x24] sm:$0xf] %v260
      %273 = vst [vmem:[#allocation8 + $0x28] sm:$0xf] %v261
      %274 = vst [vmem:[#allocation8 + $0x2c] sm:$0xf] %v262
    $region29: #{tpu_custom_call.1} parent=1 // pred_fallthru
      _
    // Predicated region
    $region30: #{tpu_custom_call.1} parent=1 // pred_check
      _
    $region31: #{tpu_custom_call.1} parent=1 // pred_check_branch
      %276 = sbr.rel (0) target = $region33
    $region32: #{tpu_custom_call.1} parent=1 // pred_region
      %278 = vsyncadd [#allocation5], 0
      %s279 = sshll.u32 [#allocation8], 4
      %s280 = int_to_ptr.vmem [resolvable:$true] %s279
      %s281 = sshll.u32 %s3, 4
      %s282 = int_to_ptr.hbm [resolvable:$true] %s281
      %287 = dma.vmem_to_hbm [thread:$0]  %s280, 768, %s282, [#allocation5], 64, 64, 4
    $region33: #{tpu_custom_call.1} parent=1 // pred_fallthru
      _
    // Predicated region
    $region34: #{tpu_custom_call.1} parent=1 // pred_check
      _
    $region35: #{tpu_custom_call.1} parent=1 // pred_check_branch
      %289 = sbr.rel (0) target = $region37
    $region36: #{tpu_custom_call.1} parent=1 // pred_region
      %291 = dma.done [#allocation5], 768
    $region37: #{tpu_custom_call.1} parent=1 // pred_fallthru
      _
    %292 = vsyncpa [#allocation4], 1
    %293 = vsyncpa [#allocation7], 1
    %294 = vsyncpa [#allocation5], 1

</llo_original>
